<compile_context>
chip_gen: v5e
topology: v5e:2x2
jax: 0.10.0
libtpu: 0.0.40
codegen_flags: <defaults>
</compile_context>

<pallas_src>
import functools

import jax
import jax.numpy as jnp
from jax.experimental import pallas as pl
from jax.experimental.pallas import tpu as pltpu


def _round_up(x, m):
    return ((x + m - 1) // m) * m


def _vmem_capacity_bytes():
    try:
        return int(pltpu.get_tpu_info().vmem_capacity_bytes)
    except Exception:
        return 64 * 1024 * 1024  # conservative fallback = v7x per-TC physical VMEM


def _tile_bytes_per_row(in_features, emb_size, out_bytes_per_elem):
    in_row = _round_up(in_features, 128) * 4                       # lane-padded x row (f32)
    out_row = _round_up(2 * emb_size, 128) * out_bytes_per_elem    # output row
    interm_row = 8 * _round_up(emb_size, 128) * 4                  # sincos f32 temporaries
    # double-buffered input + output tiles, plus in-flight intermediates
    return 2 * in_row + 2 * out_row + interm_row


def _b_bytes(in_features, emb_size):
    # B stays resident; default pipelining still double-buffers it.
    return 2 * _round_up(in_features, 8) * _round_up(emb_size, 128) * 4


def _pick_row_tile(n_rows, in_features, emb_size, out_bytes_per_elem=4):
    """Largest row tile (multiple of 8) that fits the VMEM budget, but small
    enough that the grid still has several steps (megacore + pipelining)."""
    phys = _vmem_capacity_bytes()
    budget = min(phys // 2, 48 * 1024 * 1024)

    per_row = _tile_bytes_per_row(in_features, emb_size, out_bytes_per_elem)
    avail = max(budget - _b_bytes(in_features, emb_size), per_row * 8)

    rt = avail // per_row
    rt = max(8, min(int(rt), 1024))      # >1024 rows buys <2% BW but adds VMEM risk
    rt = (rt // 8) * 8
    # Keep ~8 grid steps when the row count allows it (v7x: both TCs get work,
    # and there is something to overlap DMA with).
    steps_cap = _round_up(pl.cdiv(n_rows, 8), 8)
    rt = min(rt, max(steps_cap, 8))
    return max(rt, 8)


def _vmem_limit_bytes(row_tile, in_features, emb_size, out_bytes_per_elem=4):
    phys = _vmem_capacity_bytes()
    footprint = (row_tile * _tile_bytes_per_row(in_features, emb_size, out_bytes_per_elem)
                 + _b_bytes(in_features, emb_size))
    limit = footprint + 16 * 1024 * 1024          # headroom for Mosaic internal scratch
    limit = max(limit, 32 * 1024 * 1024)
    return int(min(limit, phys - 4 * 1024 * 1024))


# ---------------------------------------------------------------------------
# Fused sincos: one shared Cody-Waite range reduction, Cephes f32 polynomials.
# Valid to ~1e-7 abs for the |x| magnitudes RFF produces (|x| up to ~1e4).
# ---------------------------------------------------------------------------
_TWO_OVER_PI = 0.6366197723675814
_PIO2_HI = 1.5703125                      # exact in binary
_PIO2_MID = 4.837512969970703125e-4       # exact in binary
_PIO2_LO = 7.549789948768648e-8
_SIN_C1 = -1.6666654611e-1
_SIN_C2 = 8.3321608736e-3
_SIN_C3 = -1.9515295891e-4
_COS_C1 = 4.166664568298827e-2
_COS_C2 = -1.388731625493765e-3
_COS_C3 = 2.443315711809948e-5


def _sincos(x):
    n_f = jnp.floor(x * _TWO_OVER_PI + 0.5)          # nearest quadrant index (float)
    n_i = n_f.astype(jnp.int32)
    # shared 3-part Cody-Waite reduction: r = x - n*pi/2, |r| <= ~pi/4
    r = x - n_f * _PIO2_HI
    r = r - n_f * _PIO2_MID
    r = r - n_f * _PIO2_LO
    z = r * r
    sin_p = r + r * z * (_SIN_C1 + z * (_SIN_C2 + z * _SIN_C3))
    cos_p = 1.0 + z * (-0.5 + z * (_COS_C1 + z * (_COS_C2 + z * _COS_C3)))
    # quadrant fixups (two's-complement & handles negative n correctly)
    swap = (n_i & 1) == 1
    sin_v = jnp.where(swap, cos_p, sin_p)
    cos_v = jnp.where(swap, sin_p, cos_p)
    sin_v = jnp.where((n_i & 2) == 2, -sin_v, sin_v)
    cos_v = jnp.where(((n_i + 1) & 2) == 2, -cos_v, cos_v)
    return sin_v, cos_v


def _rff_kernel(x_ref, b_ref, out_ref, *, emb_size):
    # MXU matmul in f32, fused sincos on the VPU; write both halves directly
    # into the output ref slices (no concatenate -> no extra VMEM copy).
    outs = jnp.dot(x_ref[...], b_ref[...], preferred_element_type=jnp.float32)
    s, c = _sincos(outs)
    out_ref[:, :emb_size] = s.astype(out_ref.dtype)
    out_ref[:, emb_size:] = c.astype(out_ref.dtype)


@functools.partial(jax.jit, static_argnames=("row_tile", "vmem_limit", "out_dtype"))
def _rff_forward_impl(x, B, *, row_tile, vmem_limit, out_dtype):
    n_rows, in_features = x.shape
    in_features_b, emb_size = B.shape
    assert in_features == in_features_b
    out_size = 2 * emb_size

    # Ragged N handled by Pallas: partial tail block, OOB reads padded (each
    # output row depends only on its own input row, so garbage stays in dropped
    # rows), OOB writes dropped.  No wrapper pad / post-slice copies.
    grid = (pl.cdiv(n_rows, row_tile),)

    return pl.pallas_call(
        functools.partial(_rff_kernel, emb_size=emb_size),
        out_shape=jax.ShapeDtypeStruct((n_rows, out_size), out_dtype),
        grid_spec=pltpu.PrefetchScalarGridSpec(
            num_scalar_prefetch=0,
            grid=grid,
            in_specs=[
                # Big row tiles of the input; feature dim is full (equals array dim).
                pl.BlockSpec((row_tile, in_features), lambda i: (i, 0)),
                # B is small and stays resident for every grid step.
                pl.BlockSpec((in_features, emb_size), lambda i: (0, 0)),
            ],
            out_specs=pl.BlockSpec((row_tile, out_size), lambda i: (i, 0)),
        ),
        compiler_params=pltpu.CompilerParams(
            dimension_semantics=("parallel",),
            vmem_limit_bytes=vmem_limit,
        ),
    )(x, B)


def rff_forward(x, B, *, row_tile=None, out_dtype=None):
    """x: (N, in_features) f32, B: (in_features, emb_size) f32 -> (N, 2*emb_size).

    out_dtype=jnp.bfloat16 halves output HBM write traffic (v6e/v7x); math stays f32.
    """
    n_rows, in_features = x.shape
    _, emb_size = B.shape
    if out_dtype is None:
        out_dtype = x.dtype
    out_dtype = jnp.dtype(out_dtype)
    out_bytes = out_dtype.itemsize
    if row_tile is None:
        row_tile = _pick_row_tile(n_rows, in_features, emb_size, out_bytes)
    row_tile = max(8, (int(row_tile) // 8) * 8)
    vmem_limit = _vmem_limit_bytes(row_tile, in_features, emb_size, out_bytes)
    return _rff_forward_impl(x, B, row_tile=row_tile, vmem_limit=vmem_limit,
                             out_dtype=out_dtype)


def make_rff_params(key, in_features, emb_size, emb_sigma):
    """Deterministic init matching torch.normal(0, emb_sigma, (in_features, emb_size))."""
    return emb_sigma * jax.random.normal(key, (in_features, emb_size), dtype=jnp.float32)


def rff_reference(x, B):
    outs = x @ B
    return jnp.concatenate([jnp.sin(outs), jnp.cos(outs)], axis=-1)


if __name__ == "__main__":
    key = jax.random.PRNGKey(0)
    k_x, k_B = jax.random.split(key)

    # Small shapes consistent with the module: a batch of coordinate-like inputs.
    N = 13            # deliberately ragged to exercise the partial-tail-block path
    in_features = 4   # input coordinate dimension
    emb_size = 32     # -> output size 64
    emb_sigma = 10.0

    x = jax.random.normal(k_x, (N, in_features), dtype=jnp.float32)
    B = make_rff_params(k_B, in_features, emb_size, emb_sigma)

    out = rff_forward(x, B)
    out = jax.block_until_ready(out)

    ref = rff_reference(x, B)
    assert out.shape == (N, 2 * emb_size)
    assert jnp.allclose(out, ref, atol=1e-4, rtol=1e-4), "mismatch vs reference"

    print("KERNEL_OK")
</pallas_src>

<mosaic_0001>
module attributes {stable_mosaic.version = 11 : i64} {
  func.func @_rff_kernel(%arg0: i32, %arg1: memref<8x4xf32, #tpu.memory_space<vmem>>, %arg2: memref<4x32xf32, #tpu.memory_space<vmem>>, %arg3: memref<8x64xf32, #tpu.memory_space<vmem>>) attributes {dimension_semantics = [#tpu.dimension_semantics<parallel>], iteration_bounds = array<i64: 2>, scalar_prefetch = 0 : i64, scratch_operands = 0 : i64, tpu.core_type = #tpu.core_type<tc>, window_params = [{transform_indices = @transform_0, window_bounds = array<i64: 8, 4>}, {pipeline_mode = #tpu.pipeline_mode<synchronous>, transform_indices = @transform_1, window_bounds = array<i64: 4, 32>}, {transform_indices = @transform_2, window_bounds = array<i64: 8, 64>}]} {
    %c0 = arith.constant 0 : index
    %c0_0 = arith.constant 0 : index
    %0 = vector.load %arg1[%c0, %c0_0] : memref<8x4xf32, #tpu.memory_space<vmem>>, vector<8x4xf32>
    %c0_1 = arith.constant 0 : index
    %c0_2 = arith.constant 0 : index
    %1 = vector.load %arg2[%c0_1, %c0_2] : memref<4x32xf32, #tpu.memory_space<vmem>>, vector<4x32xf32>
    %cst = arith.constant dense<0.000000e+00> : vector<8x32xf32>
    %2 = tpu.matmul %0, %1, %cst {dimension_numbers = #tpu.dot_dimension_numbers<[1], [0], [0], [1], [0, 0, 1, 1], [], []>} : vector<8x4xf32>, vector<4x32xf32>, vector<8x32xf32> -> vector<8x32xf32>
    %cst_3 = arith.constant 0.636619746 : f32
    %3 = vector.broadcast %cst_3 : f32 to vector<8x32xf32>
    %4 = arith.mulf %2, %3 : vector<8x32xf32>
    %cst_4 = arith.constant 5.000000e-01 : f32
    %5 = vector.broadcast %cst_4 : f32 to vector<8x32xf32>
    %6 = arith.addf %4, %5 : vector<8x32xf32>
    %7 = math.floor %6 : vector<8x32xf32>
    %8 = arith.fptosi %7 : vector<8x32xf32> to vector<8x32xi32>
    %cst_5 = arith.constant 1.5703125 : f32
    %9 = vector.broadcast %cst_5 : f32 to vector<8x32xf32>
    %10 = arith.mulf %7, %9 : vector<8x32xf32>
    %11 = arith.subf %2, %10 : vector<8x32xf32>
    %cst_6 = arith.constant 4.83751297E-4 : f32
    %12 = vector.broadcast %cst_6 : f32 to vector<8x32xf32>
    %13 = arith.mulf %7, %12 : vector<8x32xf32>
    %14 = arith.subf %11, %13 : vector<8x32xf32>
    %cst_7 = arith.constant 7.549790e-08 : f32
    %15 = vector.broadcast %cst_7 : f32 to vector<8x32xf32>
    %16 = arith.mulf %7, %15 : vector<8x32xf32>
    %17 = arith.subf %14, %16 : vector<8x32xf32>
    %18 = arith.mulf %17, %17 : vector<8x32xf32>
    %19 = arith.mulf %17, %18 : vector<8x32xf32>
    %cst_8 = arith.constant -1.95152956E-4 : f32
    %20 = vector.broadcast %cst_8 : f32 to vector<8x32xf32>
    %21 = arith.mulf %18, %20 : vector<8x32xf32>
    %cst_9 = arith.constant 0.00833216123 : f32
    %22 = vector.broadcast %cst_9 : f32 to vector<8x32xf32>
    %23 = arith.addf %22, %21 : vector<8x32xf32>
    %24 = arith.mulf %18, %23 : vector<8x32xf32>
    %cst_10 = arith.constant -0.166666552 : f32
    %25 = vector.broadcast %cst_10 : f32 to vector<8x32xf32>
    %26 = arith.addf %25, %24 : vector<8x32xf32>
    %27 = arith.mulf %19, %26 : vector<8x32xf32>
    %28 = arith.addf %17, %27 : vector<8x32xf32>
    %cst_11 = arith.constant 2.44331568E-5 : f32
    %29 = vector.broadcast %cst_11 : f32 to vector<8x32xf32>
    %30 = arith.mulf %18, %29 : vector<8x32xf32>
    %cst_12 = arith.constant -0.00138873165 : f32
    %31 = vector.broadcast %cst_12 : f32 to vector<8x32xf32>
    %32 = arith.addf %31, %30 : vector<8x32xf32>
    %33 = arith.mulf %18, %32 : vector<8x32xf32>
    %cst_13 = arith.constant 0.0416666456 : f32
    %34 = vector.broadcast %cst_13 : f32 to vector<8x32xf32>
    %35 = arith.addf %34, %33 : vector<8x32xf32>
    %36 = arith.mulf %18, %35 : vector<8x32xf32>
    %cst_14 = arith.constant -5.000000e-01 : f32
    %37 = vector.broadcast %cst_14 : f32 to vector<8x32xf32>
    %38 = arith.addf %37, %36 : vector<8x32xf32>
    %39 = arith.mulf %18, %38 : vector<8x32xf32>
    %cst_15 = arith.constant 1.000000e+00 : f32
    %40 = vector.broadcast %cst_15 : f32 to vector<8x32xf32>
    %41 = arith.addf %40, %39 : vector<8x32xf32>
    %c1_i32 = arith.constant 1 : i32
    %42 = vector.broadcast %c1_i32 : i32 to vector<8x32xi32>
    %43 = arith.andi %8, %42 : vector<8x32xi32>
    %c1_i32_16 = arith.constant 1 : i32
    %44 = vector.broadcast %c1_i32_16 : i32 to vector<8x32xi32>
    %45 = arith.cmpi eq, %43, %44 : vector<8x32xi32>
    %46 = arith.select %45, %41, %28 : vector<8x32xi1>, vector<8x32xf32>
    %47 = arith.select %45, %28, %41 : vector<8x32xi1>, vector<8x32xf32>
    %c2_i32 = arith.constant 2 : i32
    %48 = vector.broadcast %c2_i32 : i32 to vector<8x32xi32>
    %49 = arith.andi %8, %48 : vector<8x32xi32>
    %c2_i32_17 = arith.constant 2 : i32
    %50 = vector.broadcast %c2_i32_17 : i32 to vector<8x32xi32>
    %51 = arith.cmpi eq, %49, %50 : vector<8x32xi32>
    %cst_18 = arith.constant 0.000000e+00 : f32
    %52 = vector.broadcast %cst_18 : f32 to vector<8x32xf32>
    %53 = arith.subf %52, %46 : vector<8x32xf32>
    %54 = arith.select %51, %53, %46 : vector<8x32xi1>, vector<8x32xf32>
    %c1_i32_19 = arith.constant 1 : i32
    %55 = vector.broadcast %c1_i32_19 : i32 to vector<8x32xi32>
    %56 = arith.addi %8, %55 : vector<8x32xi32>
    %c2_i32_20 = arith.constant 2 : i32
    %57 = vector.broadcast %c2_i32_20 : i32 to vector<8x32xi32>
    %58 = arith.andi %56, %57 : vector<8x32xi32>
    %c2_i32_21 = arith.constant 2 : i32
    %59 = vector.broadcast %c2_i32_21 : i32 to vector<8x32xi32>
    %60 = arith.cmpi eq, %58, %59 : vector<8x32xi32>
    %cst_22 = arith.constant 0.000000e+00 : f32
    %61 = vector.broadcast %cst_22 : f32 to vector<8x32xf32>
    %62 = arith.subf %61, %47 : vector<8x32xf32>
    %63 = arith.select %60, %62, %47 : vector<8x32xi1>, vector<8x32xf32>
    %c0_23 = arith.constant 0 : index
    %c0_24 = arith.constant 0 : index
    %64 = vector.load %arg3[%c0_23, %c0_24] : memref<8x64xf32, #tpu.memory_space<vmem>>, vector<8x32xf32>
    tpu.vector_store %arg3[%c0_23, %c0_24], %54 {strides = array<i32>} : memref<8x64xf32, #tpu.memory_space<vmem>>, vector<8x32xf32>,
    %c0_25 = arith.constant 0 : index
    %c32 = arith.constant 32 : index
    %65 = vector.load %arg3[%c0_25, %c32] : memref<8x64xf32, #tpu.memory_space<vmem>>, vector<8x32xf32>
    tpu.vector_store %arg3[%c0_25, %c32], %63 {strides = array<i32>} : memref<8x64xf32, #tpu.memory_space<vmem>>, vector<8x32xf32>,
    return
  }
  func.func @transform_0(%arg0: i32) -> (i32, i32) {
    %c0_i32 = arith.constant 0 : i32
    %c0_i32_0 = arith.constant 0 : i32
    return %arg0, %c0_i32 : i32, i32
  }
  func.func @transform_1(%arg0: i32) -> (i32, i32) {
    %c0_i32 = arith.constant 0 : i32
    %c0_i32_0 = arith.constant 0 : i32
    %c0_i32_1 = arith.constant 0 : i32
    return %c0_i32, %c0_i32_0 : i32, i32
  }
  func.func @transform_2(%arg0: i32) -> (i32, i32) {
    %c0_i32 = arith.constant 0 : i32
    %c0_i32_0 = arith.constant 0 : i32
    return %arg0, %c0_i32 : i32, i32
  }
}

</mosaic_0001>

<llo_original>
// kernel: _rff_forward_impl.1
$region0: #{_rff_forward_impl.1}
  #allocation0 [shape = 'u32[]', space=smem, size = 0x4, offset = 0x4, fixed_abs, tag = 'smem constant byte address 0x4 - core index']
  #allocation1 [shape = 'u32[72,128]{1,0:T(1,128)}', space=vmem, size = 0x9000, scoped, tag = 'internal scratch']
  %s0 = inlined_call_operand.vmem [shape: f32[13,4], index: 0, kind: input, shape index: {}]
  %s1 = inlined_call_operand.vmem [shape: f32[4,32], index: 1, kind: input, shape index: {}]
  %s2 = inlined_call_operand.hbm [shape: f32[13,64], index: 2, kind: output, shape index: {}]
  %s3 = sld [smem:[#allocation0]]
  $region41: #{_rff_forward_impl.1} parent=0
    _
  %s5 = ssub.s32 1, %s3
  %s6 = scalar_select 0, %s5, %s3
  $region1: #{_rff_forward_impl.1} parent=0
    #allocation2 [shape = 'u8[8192]{0}', space=vmem, size = 0x2000, scoped, tag = 'output window, operand 0']
    #allocation3 [shape = 's32[2]{0}', space=sflag, size = 0x8, scoped, tag = 'scoped memory for _rff_forward_impl.1']
    %7 = vsyncpa [#allocation3], 0
    %s8 = scalar_lea.sflag [#allocation3], 1
    %9 = vsyncpa %s8, 0
    loop: start=0, step=1, limit=4
    $region2: #{_rff_forward_impl.1} parent=1 // loop_pre_header
      _
    $region3: #{_rff_forward_impl.1} parent=1 // loop_header
      %s11 = sphi 0, %s15
      %p12 = scmp.ge.s32.totalorder %s11, 4
      %s21 = sphi 0, %s23
      %s24 = sphi 0, %s21
      %s25 = sphi 0, %s24
      %s41 = sphi 0, %s25
      %s45 = sphi 0, %s45
      %s47 = sphi 0, %s45
      %s48 = sphi 0, %s47
      %s62 = sphi 0, %s48
      %s68 = sphi 0, %s70
      %s71 = sphi 0, %s68
      %s72 = sphi 0, %s71
      %s88 = sphi 0, %s72
    $region4: #{_rff_forward_impl.1} parent=1 // loop_header_branch
      %14 = sbr.rel (%p12) target = $region8
    $region5: #{_rff_forward_impl.1} parent=1 // loop_body
      %s16 = ssub.s32 %s11, 1
      %s17 = ssub.s32 %s11, 2
      %s18 = sadd.s32 %s11, 1
      %s19 = ssub.s32 %s11, %s18
      %p20 = scmp.eq.s32.totalorder %s19, 0
      %s22 = sadd.s32 %s21, 1
      %s23 = scalar_select %p20, %s21, %s22
      %p26 = pneg %p20
      %p27 = scmp.eq.s32.totalorder %s11, 1
      %p28 = por %p26, %p27
      %p29 = scmp.ne.s32.totalorder %s21, %s24
      %p30 = scmp.eq.s32.totalorder %s11, 0
      %p31 = por %p29, %p30
      %p32 = scmp.ne.s32.totalorder %s21, %s24
      %p33 = scmp.eq.s32.totalorder %s16, 1
      %p34 = por %p32, %p33
      %p35 = scmp.ne.s32.totalorder %s24, %s25
      %p36 = scmp.eq.s32.totalorder %s16, 0
      %p37 = por %p35, %p36
      %p38 = scmp.ne.s32.totalorder %s24, %s25
      %p39 = scmp.eq.s32.totalorder %s17, 1
      %p40 = por %p38, %p39
      %p42 = scmp.ne.s32.totalorder %s25, %s41
      %p43 = scmp.eq.s32.totalorder %s17, 0
      %p44 = por %p42, %p43
      %s46 = sadd.s32 %s45, 1
      %p49 = scmp.eq.s32.totalorder %s11, 1
      %p50 = scmp.ne.s32.totalorder %s45, %s47
      %p51 = scmp.eq.s32.totalorder %s11, 0
      %p52 = por %p50, %p51
      %p53 = scmp.ne.s32.totalorder %s45, %s47
      %p54 = scmp.eq.s32.totalorder %s16, 1
      %p55 = por %p53, %p54
      %p56 = scmp.ne.s32.totalorder %s47, %s48
      %p57 = scmp.eq.s32.totalorder %s16, 0
      %p58 = por %p56, %p57
      %p59 = scmp.ne.s32.totalorder %s47, %s48
      %p60 = scmp.eq.s32.totalorder %s17, 1
      %p61 = por %p59, %p60
      %p63 = scmp.ne.s32.totalorder %s48, %s62
      %p64 = scmp.eq.s32.totalorder %s17, 0
      %p65 = por %p63, %p64
      %s66 = ssub.s32 %s11, %s18
      %p67 = scmp.eq.s32.totalorder %s66, 0
      %s69 = sadd.s32 %s68, 1
      %s70 = scalar_select %p67, %s68, %s69
      %p73 = pneg %p67
      %p74 = scmp.eq.s32.totalorder %s11, 1
      %p75 = por %p73, %p74
      %p76 = scmp.ne.s32.totalorder %s68, %s71
      %p77 = scmp.eq.s32.totalorder %s11, 0
      %p78 = por %p76, %p77
      %p79 = scmp.ne.s32.totalorder %s68, %s71
      %p80 = scmp.eq.s32.totalorder %s16, 1
      %p81 = por %p79, %p80
      %p82 = scmp.ne.s32.totalorder %s71, %s72
      %p83 = scmp.eq.s32.totalorder %s16, 0
      %p84 = por %p82, %p83
      %p85 = scmp.ne.s32.totalorder %s71, %s72
      %p86 = scmp.eq.s32.totalorder %s17, 1
      %p87 = por %p85, %p86
      %p89 = scmp.ne.s32.totalorder %s72, %s88
      %p90 = scmp.eq.s32.totalorder %s17, 0
      %p91 = por %p89, %p90
      %p92 = scmp.le.s32.totalorder 1, %s11
      %p93 = scmp.lt.s32.totalorder %s11, 3
      %p94 = pnand %p92, %p93
      %p95 = pneg %p94
      // Predicated region
      $region9: #{_rff_forward_impl.1} parent=5 // pred_check
        _
      $region10: #{_rff_forward_impl.1} parent=5 // pred_check_branch
        %97 = sbr.rel (%p94) target = $region12
      $region11: #{_rff_forward_impl.1} parent=5 // pred_region
        %s98 = ssub.s32 %s11, 1
        // Predicated region
        $region13: #{_rff_forward_impl.1} parent=11 // pred_check
          %p99 = pneg %p58
        $region14: #{_rff_forward_impl.1} parent=11 // pred_check_branch
          %101 = sbr.rel (%p99) target = $region16
        $region15: #{_rff_forward_impl.1} parent=11 // pred_region
          _
        $region16: #{_rff_forward_impl.1} parent=11 // pred_fallthru
          _
      $region12: #{_rff_forward_impl.1} parent=5 // pred_fallthru
        _
      %p102 = scmp.lt.s32.totalorder %s11, 2
      // Predicated region
      $region17: #{_rff_forward_impl.1} parent=5 // pred_check
        %p103 = pneg %p102
      $region18: #{_rff_forward_impl.1} parent=5 // pred_check_branch
        %105 = sbr.rel (%p103) target = $region20
      $region19: #{_rff_forward_impl.1} parent=5 // pred_region
        // Predicated region
        $region21: #{_rff_forward_impl.1} parent=19 // pred_check
          %p106 = pneg %p31
        $region22: #{_rff_forward_impl.1} parent=19 // pred_check_branch
          %108 = sbr.rel (%p106) target = $region24
        $region23: #{_rff_forward_impl.1} parent=19 // pred_region
          %p109 = scmp.lt.s32.totalorder %s11, 1
          %s110 = scalar_select %p109, %s11, 1
          %s111 = smul.addr %s110, 8
          %s112 = scalar_lea.vmem %s0, %s111
        $region24: #{_rff_forward_impl.1} parent=19 // pred_fallthru
          _
      $region20: #{_rff_forward_impl.1} parent=5 // pred_fallthru
        _
      %p113 = scmp.le.s32.totalorder 1, %s11
      %p114 = scmp.lt.s32.totalorder %s11, 3
      %p115 = pnand %p113, %p114
      %p116 = pneg %p115
      // Predicated region
      $region25: #{_rff_forward_impl.1} parent=5 // pred_check
        _
      $region26: #{_rff_forward_impl.1} parent=5 // pred_check_branch
        %118 = sbr.rel (%p115) target = $region28
      $region27: #{_rff_forward_impl.1} parent=5 // pred_region
        %s119 = ssub.s32 %s11, 1
        %p120 = scmp.lt.s32.totalorder %s16, 1
        %s121 = scalar_select %p120, %s16, 1
        %s122 = smul.addr %s121, 8
        %s123 = scalar_lea.vmem %s0, %s122
        %p124 = pneg %p37
        %p125 = pneg %p34
        %p126 = pneg %p58
        %p127 = pneg %p55
        %p128 = pneg %p84
        %p129 = pneg %p81
        %s130 = sand.u32 %s71, 1
        %s131 = scalar_lea.sflag [#allocation3], %s130
        %s132 = sand.u32 %s71, 1
        %s133 = smul.addr %s132, 8
        %s134 = scalar_lea.vmem [#allocation2], %s133
        %p135 = scmp.lt.s32.totalorder %s16, 1
        %s136 = scalar_select %p135, %s16, 1
        %s137 = smul.addr %s136, 8
        %s138 = scalar_lea.vmem %s0, %s137
        %v139 = vld [vmem:[%s138] sm:$0xff]
        %v140 = vld [vmem:[%s1] sm:$0xf]
        %vm141 = vcmask 31744
        %v143 = vsel %vm141, %v139, 0
        %vm145 = vcmask 1043456
        %v147 = vsel %vm145, %v140, 0
        %149 = vmatpush.msra.mxu0 0.0
        %150 = vmatpush.msra.mxu0 0.0
        %151 = vmatpush.msra.mxu0 0.0
        %152 = vmatpush.msra.mxu0 0.0
        %153 = vmatpush.msra.mxu0 0.0
        %154 = vmatpush.msra.mxu0 0.0
        %155 = vmatpush.msra.mxu0 0.0
        %156 = vmatpush.msra.mxu0 0.0
        %157 = vmatpush.msra.mxu0 0.0
        %158 = vmatpush.msra.mxu0 0.0
        %159 = vmatpush.msra.mxu0 0.0
        %160 = vmatpush.msra.mxu0 0.0
        %161 = vmatpush.msra.mxu0 0.0
        %162 = vmatpush.msra.mxu0 0.0
        %163 = vmatpush.msra.mxu0 0.0
        %164 = vmatpush.msra.mxu0 %v147
        %165 = vmatmul.f32.gmra.mxu0 %v143
        %v166 = vpop.f32.mrf.mxu0
        %v167 = vadd.f32 0.0, %v166
        %168 = vdwg.mxu0
        %v169 = vmul.f32 %v167, 0.63661975
        %v170 = vadd.f32 %v169, 0.5
        %v171 = vfloor.f32 %v170
        %v172 = vcvt.f32.s32.to.zero.pseudo %v171
        %v173 = vmul.f32 %v171, 1.5703125
        %v174 = vsub.f32 %v167, %v173
        %v175 = vmul.f32 %v171, 0.0004837513
        %v176 = vsub.f32 %v174, %v175
        %v177 = vmul.f32 %v171, 7.54979e-08
        %v178 = vsub.f32 %v176, %v177
        %v179 = vmul.f32 %v178, %v178
        %v180 = vmul.f32 %v178, %v179
        %v181 = vmul.f32 %v179, -0.00019515296
        %v182 = vadd.f32 %v181, 0.008332161
        %v183 = vmul.f32 %v179, %v182
        %v184 = vadd.f32 %v183, -0.16666655
        %v185 = vmul.f32 %v180, %v184
        %v186 = vadd.f32 %v178, %v185
        %v187 = vmul.f32 %v179, 2.4433157e-05
        %v188 = vadd.f32 %v187, -0.0013887316
        %v189 = vmul.f32 %v179, %v188
        %v190 = vadd.f32 %v189, 0.041666646
        %v191 = vmul.f32 %v179, %v190
        %v192 = vadd.f32 %v191, -0.5
        %v193 = vmul.f32 %v179, %v192
        %v194 = vadd.f32 %v193, 1.0
        %v195 = vand.u32 %v172, 1
        %vm196 = vcmp.eq.s32.totalorder %v195, 1
        %v197 = vsel %vm196, %v194, %v186
        %v198 = vsel %vm196, %v186, %v194
        %v199 = vand.u32 %v172, 2
        %vm200 = vcmp.eq.s32.totalorder %v199, 2
        %v201 = vsub.f32 0.0, %v197
        %v202 = vsel %vm200, %v201, %v197
        %v203 = vadd.s32 %v172, 1
        %v204 = vand.u32 %v203, 2
        %vm205 = vcmp.eq.s32.totalorder %v204, 2
        %v206 = vsub.f32 0.0, %v198
        %v207 = vsel %vm205, %v206, %v198
        %vm208 = vcmask 261120
        %209 = vst.msk [vmem:[%s134] sm:$0xff] %vm208, %v202
        %211 = vrot.lane.b32.xlu0 %v207, 32
        %v212 = vpop.permute.xlu0 %211
        %vm214 = vcmask 523520
        %215 = vst.msk [vmem:[%s134] sm:$0xff] %vm214, %v212
        %s216 = sand.u32 %s71, 1
        %s217 = scalar_lea.sflag [#allocation3], %s216
        %s218 = sand.u32 %s71, 1
        %s219 = smul.addr %s218, 8
        %s220 = scalar_lea.vmem [#allocation2], %s219
        // Predicated region
        $region29: #{_rff_forward_impl.1} parent=27 // pred_check
          %p221 = pneg %p81
        $region30: #{_rff_forward_impl.1} parent=27 // pred_check_branch
          %223 = sbr.rel (%p221) target = $region32
        $region31: #{_rff_forward_impl.1} parent=27 // pred_region
          %225 = vsyncadd %s217, 0
          %s226 = smul.addr %s16, 8
          %s227 = scalar_lea.hbm %s2, %s226
          %s229 = sshll.u32 %s220, 4
          %s230 = int_to_ptr.vmem [resolvable:$true] %s229
          %s231 = sshll.u32 %s227, 4
          %s232 = int_to_ptr.hbm [resolvable:$true] %s231
          %234 = dma.vmem_to_hbm [thread:$0]  %s230, 128, %s232, %s217
        $region32: #{_rff_forward_impl.1} parent=27 // pred_fallthru
          _
      $region28: #{_rff_forward_impl.1} parent=5 // pred_fallthru
        _
      %p235 = scmp.le.s32.totalorder 2, %s11
      // Predicated region
      $region33: #{_rff_forward_impl.1} parent=5 // pred_check
        %p236 = pneg %p235
      $region34: #{_rff_forward_impl.1} parent=5 // pred_check_branch
        %238 = sbr.rel (%p236) target = $region36
      $region35: #{_rff_forward_impl.1} parent=5 // pred_region
        %s239 = ssub.s32 %s11, 2
        // Predicated region
        $region37: #{_rff_forward_impl.1} parent=35 // pred_check
          %p240 = pneg %p87
        $region38: #{_rff_forward_impl.1} parent=35 // pred_check_branch
          %242 = sbr.rel (%p240) target = $region40
        $region39: #{_rff_forward_impl.1} parent=35 // pred_region
          %s243 = sand.u32 %s72, 1
          %s244 = scalar_lea.sflag [#allocation3], %s243
          %s245 = sand.u32 %s72, 1
          %s246 = smul.addr %s245, 8
          %s247 = scalar_lea.vmem [#allocation2], %s246
          %249 = dma.done %s244, 128
        $region40: #{_rff_forward_impl.1} parent=35 // pred_fallthru
          _
      $region36: #{_rff_forward_impl.1} parent=5 // pred_fallthru
        _
    $region6: #{_rff_forward_impl.1} parent=1 // loop_footer
      %s15 = sadd.s32 1, %s11
    $region7: #{_rff_forward_impl.1} parent=1 // loop_footer_branch
      %10 = sbr.rel target = $region3
    $region8: #{_rff_forward_impl.1} parent=1 // loop_exit
      _
    %250 = vsyncpa [#allocation3], 1
    %s251 = scalar_lea.sflag [#allocation3], 1
    %252 = vsyncpa %s251, 1

</llo_original>
